<compile_context>
chip_gen: v7x
topology: tpu7x:2x2x1
jax: 0.10.0
libtpu: 0.0.40
codegen_flags: <defaults>
</compile_context>

<pallas_src>
import jax
import jax.numpy as jnp
from jax.experimental import pallas as pl
from jax.experimental.pallas import tpu as pltpu

_VIEWS = ('L_CC', 'R_CC', 'L_MLO', 'R_MLO')


def _four_view_kernel(x_ref, wb_ref, bb_ref, wc_ref, bc_ref, out_ref):
    """x_ref: (4*B, C, HW) stacked views.  out_ref: (B, num_classes_padded)."""
    B = out_ref.shape[0]
    NCP = out_ref.shape[1]
    D = wb_ref.shape[1]              # backbone out_dim
    n_views = x_ref.shape[0] // B    # == 4

    # ---- shared backbone, all 4 views in one shot -------------------------
    # global average pool over spatial (single lane-axis reduce) -> (4B, C)
    gap = jnp.mean(x_ref[...], axis=-1)
    # Linear(C -> out_dim) + ReLU : one MXU matmul for all views (shared W)
    feat = jnp.dot(gap, wb_ref[...], preferred_element_type=jnp.float32)
    feat = jnp.maximum(feat + bb_ref[...], 0.0)             # (4B, out_dim)

    # ---- classifier: Linear(4*out_dim -> num_classes) ---------------------
    # torch.cat([...], dim=1) @ wc  ==  sum_v  feat_v @ wc[v*D:(v+1)*D, :]
    # Accumulate per view instead of materializing the lane-axis concat.
    acc = jnp.broadcast_to(bc_ref[...], (B, NCP))
    for v in range(n_views):                                 # unrolled (4)
        f_v = feat[v * B:(v + 1) * B, :]                     # (B, out_dim)
        w_v = wc_ref[pl.ds(v * D, D), :]                     # (out_dim, NCP)
        acc = acc + jnp.dot(f_v, w_v, preferred_element_type=jnp.float32)
    out_ref[...] = acc


def four_view_forward(batch, params):
    B, C, H, W = batch['L_CC'].shape
    out_dim = params['wb'].shape[1]
    num_classes = params['wc'].shape[1]

    # Stack the 4 views into one operand: (4, B, C, H, W) -> (4B, C, HW).
    x = jnp.stack([batch[v] for v in _VIEWS], axis=0)
    x = x.reshape(4 * B, C, H * W).astype(jnp.float32)
    # TODO(synk): at realistic mammography resolutions, keep x in bf16 and add
    # a spatial grid axis with a partial-GAP accumulator (pl.when init /
    # finalize) sized to the target chip's VMEM instead of one full block.

    # Lane-pad the classifier so the output store is a full 128-lane vst.
    ncp = pl.cdiv(num_classes, 128) * 128
    pad = ncp - num_classes
    wb = params['wb'].astype(jnp.float32)
    bb = params['bb'].astype(jnp.float32).reshape(1, out_dim)
    wc = jnp.pad(params['wc'].astype(jnp.float32), ((0, 0), (0, pad)))
    bc = jnp.pad(params['bc'].astype(jnp.float32).reshape(1, -1),
                 ((0, 0), (0, pad)))

    vmem = pl.BlockSpec(memory_space=pltpu.MemorySpace.VMEM)
    out = pl.pallas_call(
        _four_view_kernel,
        out_shape=jax.ShapeDtypeStruct((B, ncp), jnp.float32),
        in_specs=[vmem, vmem, vmem, vmem, vmem],
        out_specs=vmem,
    )(x, wb, bb, wc, bc)
    return out[:, :num_classes]


def _reference_forward(batch, params):
    def backbone(x):
        gap = jnp.mean(x.reshape(x.shape[0], x.shape[1], -1), axis=-1)
        return jnp.maximum(gap @ params['wb'] + params['bb'], 0.0)

    out_all = jnp.concatenate([backbone(batch[v]) for v in _VIEWS], axis=1)
    return out_all @ params['wc'] + params['bc']


if __name__ == "__main__":
    B, C, H, W = 2, 4, 16, 16
    out_dim, num_classes = 128, 3

    key = jax.random.PRNGKey(0)
    k = jax.random.split(key, 8)
    batch = {
        'L_CC':  jax.random.normal(k[0], (B, C, H, W), jnp.float32),
        'R_CC':  jax.random.normal(k[1], (B, C, H, W), jnp.float32),
        'L_MLO': jax.random.normal(k[2], (B, C, H, W), jnp.float32),
        'R_MLO': jax.random.normal(k[3], (B, C, H, W), jnp.float32),
    }
    # Deterministic synthetic parameters (no checkpoint loading).
    params = {
        'wb': jax.random.normal(k[4], (C, out_dim), jnp.float32) * 0.1,
        'bb': jax.random.normal(k[5], (out_dim,), jnp.float32) * 0.1,
        'wc': jax.random.normal(k[6], (4 * out_dim, num_classes),
                                jnp.float32) * 0.1,
        'bc': jax.random.normal(k[7], (num_classes,), jnp.float32) * 0.1,
    }

    out = four_view_forward(batch, params)
    out = jax.block_until_ready(out)

    ref = _reference_forward(batch, params)
    assert out.shape == (B, num_classes)
    assert jnp.allclose(out, ref, atol=1e-4, rtol=1e-4)
    print("KERNEL_OK")
</pallas_src>

<mosaic_0001>
module attributes {stable_mosaic.version = 11 : i64} {
  func.func @_four_view_kernel(%arg0: memref<8x4x256xf32, #tpu.memory_space<vmem>>, %arg1: memref<4x128xf32, #tpu.memory_space<vmem>>, %arg2: memref<1x128xf32, #tpu.memory_space<vmem>>, %arg3: memref<512x128xf32, #tpu.memory_space<vmem>>, %arg4: memref<1x128xf32, #tpu.memory_space<vmem>>, %arg5: memref<2x128xf32, #tpu.memory_space<vmem>>) attributes {dimension_semantics = [], scalar_prefetch = 0 : i64, scratch_operands = 0 : i64, tpu.core_type = #tpu.core_type<tc>} {
    %c0 = arith.constant 0 : index
    %c0_0 = arith.constant 0 : index
    %c0_1 = arith.constant 0 : index
    %0 = vector.load %arg0[%c0, %c0_0, %c0_1] : memref<8x4x256xf32, #tpu.memory_space<vmem>>, vector<8x4x256xf32>
    %cst = arith.constant dense<0.000000e+00> : vector<8x4xf32>
    %1 = vector.multi_reduction <add>, %0, %cst [2] : vector<8x4x256xf32> to vector<8x4xf32>
    %cst_2 = arith.constant 2.560000e+02 : f32
    %2 = vector.broadcast %cst_2 : f32 to vector<8x4xf32>
    %3 = arith.divf %1, %2 : vector<8x4xf32>
    %c0_3 = arith.constant 0 : index
    %c0_4 = arith.constant 0 : index
    %4 = vector.load %arg1[%c0_3, %c0_4] : memref<4x128xf32, #tpu.memory_space<vmem>>, vector<4x128xf32>
    %cst_5 = arith.constant dense<0.000000e+00> : vector<8x128xf32>
    %5 = tpu.matmul %3, %4, %cst_5 {dimension_numbers = #tpu.dot_dimension_numbers<[1], [0], [0], [1], [0, 0, 1, 1], [], []>} : vector<8x4xf32>, vector<4x128xf32>, vector<8x128xf32> -> vector<8x128xf32>
    %c0_6 = arith.constant 0 : index
    %c0_7 = arith.constant 0 : index
    %6 = vector.load %arg2[%c0_6, %c0_7] : memref<1x128xf32, #tpu.memory_space<vmem>>, vector<1x128xf32>
    %7 = vector.broadcast %6 : vector<1x128xf32> to vector<8x128xf32>
    %8 = arith.addf %5, %7 : vector<8x128xf32>
    %cst_8 = arith.constant 0.000000e+00 : f32
    %9 = vector.broadcast %cst_8 : f32 to vector<8x128xf32>
    %10 = arith.maximumf %8, %9 : vector<8x128xf32>
    %c0_9 = arith.constant 0 : index
    %c0_10 = arith.constant 0 : index
    %11 = vector.load %arg4[%c0_9, %c0_10] : memref<1x128xf32, #tpu.memory_space<vmem>>, vector<1x128xf32>
    %12 = vector.shape_cast %11 : vector<1x128xf32> to vector<1x128xf32>
    %13 = vector.broadcast %12 : vector<1x128xf32> to vector<2x128xf32>
    %14 = vector.extract_strided_slice %10 {offsets = [0, 0], sizes = [2, 128], strides = [1, 1]} : vector<8x128xf32> to vector<2x128xf32>
    %c0_11 = arith.constant 0 : index
    %c0_12 = arith.constant 0 : index
    %15 = vector.load %arg3[%c0_11, %c0_12] : memref<512x128xf32, #tpu.memory_space<vmem>>, vector<128x128xf32>
    %cst_13 = arith.constant dense<0.000000e+00> : vector<2x128xf32>
    %16 = tpu.matmul %14, %15, %cst_13 {dimension_numbers = #tpu.dot_dimension_numbers<[1], [0], [0], [1], [0, 0, 1, 1], [], []>} : vector<2x128xf32>, vector<128x128xf32>, vector<2x128xf32> -> vector<2x128xf32>
    %17 = arith.addf %13, %16 : vector<2x128xf32>
    %18 = vector.extract_strided_slice %10 {offsets = [2, 0], sizes = [2, 128], strides = [1, 1]} : vector<8x128xf32> to vector<2x128xf32>
    %c128 = arith.constant 128 : index
    %c0_14 = arith.constant 0 : index
    %19 = vector.load %arg3[%c128, %c0_14] : memref<512x128xf32, #tpu.memory_space<vmem>>, vector<128x128xf32>
    %cst_15 = arith.constant dense<0.000000e+00> : vector<2x128xf32>
    %20 = tpu.matmul %18, %19, %cst_15 {dimension_numbers = #tpu.dot_dimension_numbers<[1], [0], [0], [1], [0, 0, 1, 1], [], []>} : vector<2x128xf32>, vector<128x128xf32>, vector<2x128xf32> -> vector<2x128xf32>
    %21 = arith.addf %17, %20 : vector<2x128xf32>
    %22 = vector.extract_strided_slice %10 {offsets = [4, 0], sizes = [2, 128], strides = [1, 1]} : vector<8x128xf32> to vector<2x128xf32>
    %c256 = arith.constant 256 : index
    %c0_16 = arith.constant 0 : index
    %23 = vector.load %arg3[%c256, %c0_16] : memref<512x128xf32, #tpu.memory_space<vmem>>, vector<128x128xf32>
    %cst_17 = arith.constant dense<0.000000e+00> : vector<2x128xf32>
    %24 = tpu.matmul %22, %23, %cst_17 {dimension_numbers = #tpu.dot_dimension_numbers<[1], [0], [0], [1], [0, 0, 1, 1], [], []>} : vector<2x128xf32>, vector<128x128xf32>, vector<2x128xf32> -> vector<2x128xf32>
    %25 = arith.addf %21, %24 : vector<2x128xf32>
    %26 = vector.extract_strided_slice %10 {offsets = [6, 0], sizes = [2, 128], strides = [1, 1]} : vector<8x128xf32> to vector<2x128xf32>
    %c384 = arith.constant 384 : index
    %c0_18 = arith.constant 0 : index
    %27 = vector.load %arg3[%c384, %c0_18] : memref<512x128xf32, #tpu.memory_space<vmem>>, vector<128x128xf32>
    %cst_19 = arith.constant dense<0.000000e+00> : vector<2x128xf32>
    %28 = tpu.matmul %26, %27, %cst_19 {dimension_numbers = #tpu.dot_dimension_numbers<[1], [0], [0], [1], [0, 0, 1, 1], [], []>} : vector<2x128xf32>, vector<128x128xf32>, vector<2x128xf32> -> vector<2x128xf32>
    %29 = arith.addf %25, %28 : vector<2x128xf32>
    %c0_20 = arith.constant 0 : index
    %c0_21 = arith.constant 0 : index
    %30 = vector.load %arg5[%c0_20, %c0_21] : memref<2x128xf32, #tpu.memory_space<vmem>>, vector<2x128xf32>
    tpu.vector_store %arg5[%c0_20, %c0_21], %29 {strides = array<i32>} : memref<2x128xf32, #tpu.memory_space<vmem>>, vector<2x128xf32>,
    return
  }
}

</mosaic_0001>

<llo_original>
// kernel: tpu_custom_call.1
$region0: #{tpu_custom_call.1}
  #allocation0 [shape = 'u32[]', space=smem, size = 0x4, offset = 0x4, fixed_abs, tag = 'smem constant byte address 0x4 - core index']
  #allocation1 [shape = 'u32[144,128]{1,0:T(1,128)}', space=vmem, size = 0x12000, scoped, tag = 'internal scratch']
  %s0 = inlined_call_operand.hbm [shape: f32[8,4,256], index: 0, kind: input, shape index: {}]
  %s1 = inlined_call_operand.hbm [shape: f32[4,128], index: 1, kind: input, shape index: {}]
  %s2 = inlined_call_operand.vmem [shape: f32[1,128], index: 2, kind: input, shape index: {}]
  %s3 = inlined_call_operand.hbm [shape: f32[512,128], index: 3, kind: input, shape index: {}]
  %s4 = inlined_call_operand.vmem [shape: f32[1,128], index: 4, kind: input, shape index: {}]
  %s5 = inlined_call_operand.hbm [shape: f32[2,128], index: 5, kind: output, shape index: {}]
  %s6 = sld [smem:[#allocation0]]
  $region42: #{tpu_custom_call.1} parent=0
    _
  %s8 = ssub.s32 1, %s6
  %s9 = scalar_select 0, %s8, %s6
  $region1: #{tpu_custom_call.1} parent=0
    #allocation2 [shape = 'u8[32768]{0}', space=vmem, size = 0x8000, scoped, tag = 'input window, operand 0, single buffered']
    #allocation3 [shape = 's32[1]{0}', space=sflag, size = 0x4, scoped, tag = 'scoped memory for tpu_custom_call.1']
    #allocation4 [shape = 's32[1]{0}', space=sflag, size = 0x4, scoped, tag = 'scoped memory for tpu_custom_call.1']
    #allocation5 [shape = 'u8[2048]{0}', space=vmem, size = 0x800, scoped, tag = 'input window, operand 1, single buffered']
    #allocation6 [shape = 's32[1]{0}', space=sflag, size = 0x4, scoped, tag = 'scoped memory for tpu_custom_call.1']
    #allocation7 [shape = 'u8[262144]{0}', space=vmem, size = 0x40000, scoped, tag = 'input window, operand 3, single buffered']
    #allocation8 [shape = 'u8[1024]{0}', space=vmem, size = 0x400, scoped, tag = 'output window, operand 0, single buffered']
    %10 = vsyncpa [#allocation3], 0
    %11 = vsyncpa [#allocation6], 0
    %12 = vsyncpa [#allocation4], 0
    // Predicated region
    $region2: #{tpu_custom_call.1} parent=1 // pred_check
      _
    $region3: #{tpu_custom_call.1} parent=1 // pred_check_branch
      %14 = sbr.rel (0) target = $region5
    $region4: #{tpu_custom_call.1} parent=1 // pred_region
      %s16 = ssub.s32 1024, 1024
      %17 = vsyncadd [#allocation3], %s16
      %s18 = sshll.u32 [#allocation2], 4
      %s19 = int_to_ptr.vmem [resolvable:$true] %s18
      %24 = dma.hbm_to_vmem [thread:$0]  %s0, 1024, %s19, [#allocation3], 128, 128, 8
    $region5: #{tpu_custom_call.1} parent=1 // pred_fallthru
      _
    // Predicated region
    $region6: #{tpu_custom_call.1} parent=1 // pred_check
      _
    $region7: #{tpu_custom_call.1} parent=1 // pred_check_branch
      %26 = sbr.rel (0) target = $region9
    $region8: #{tpu_custom_call.1} parent=1 // pred_region
      %s28 = ssub.s32 64, 64
      %29 = vsyncadd [#allocation6], %s28
      %s31 = sshll.u32 [#allocation5], 4
      %s32 = int_to_ptr.vmem [resolvable:$true] %s31
      %34 = dma.hbm_to_vmem [thread:$0]  %s1, 64, %s32, [#allocation6]
    $region9: #{tpu_custom_call.1} parent=1 // pred_fallthru
      _
    // Predicated region
    $region10: #{tpu_custom_call.1} parent=1 // pred_check
      _
    $region11: #{tpu_custom_call.1} parent=1 // pred_check_branch
      %36 = sbr.rel (0) target = $region13
    $region12: #{tpu_custom_call.1} parent=1 // pred_region
      _
    $region13: #{tpu_custom_call.1} parent=1 // pred_fallthru
      _
    // Predicated region
    $region14: #{tpu_custom_call.1} parent=1 // pred_check
      _
    $region15: #{tpu_custom_call.1} parent=1 // pred_check_branch
      %38 = sbr.rel (0) target = $region17
    $region16: #{tpu_custom_call.1} parent=1 // pred_region
      %s40 = ssub.s32 8192, 8192
      %41 = vsyncadd [#allocation6], %s40
      %s42 = sshll.u32 [#allocation7], 4
      %s43 = int_to_ptr.vmem [resolvable:$true] %s42
      %48 = dma.hbm_to_vmem [thread:$0]  %s3, 8192, %s43, [#allocation6], 128, 128, 8
    $region17: #{tpu_custom_call.1} parent=1 // pred_fallthru
      _
    // Predicated region
    $region18: #{tpu_custom_call.1} parent=1 // pred_check
      _
    $region19: #{tpu_custom_call.1} parent=1 // pred_check_branch
      %50 = sbr.rel (0) target = $region21
    $region20: #{tpu_custom_call.1} parent=1 // pred_region
      _
    $region21: #{tpu_custom_call.1} parent=1 // pred_fallthru
      _
    // Predicated region
    $region22: #{tpu_custom_call.1} parent=1 // pred_check
      _
    $region23: #{tpu_custom_call.1} parent=1 // pred_check_branch
      %52 = sbr.rel (0) target = $region25
    $region24: #{tpu_custom_call.1} parent=1 // pred_region
      %53 = dma.done [#allocation3], 1024
    $region25: #{tpu_custom_call.1} parent=1 // pred_fallthru
      _
    // Predicated region
    $region26: #{tpu_custom_call.1} parent=1 // pred_check
      _
    $region27: #{tpu_custom_call.1} parent=1 // pred_check_branch
      %55 = sbr.rel (0) target = $region29
    $region28: #{tpu_custom_call.1} parent=1 // pred_region
      %56 = dma.done [#allocation6], 64
    $region29: #{tpu_custom_call.1} parent=1 // pred_fallthru
      _
    // Predicated region
    $region30: #{tpu_custom_call.1} parent=1 // pred_check
      _
    $region31: #{tpu_custom_call.1} parent=1 // pred_check_branch
      %58 = sbr.rel (0) target = $region33
    $region32: #{tpu_custom_call.1} parent=1 // pred_region
      %59 = dma.done [#allocation6], 8192
    $region33: #{tpu_custom_call.1} parent=1 // pred_fallthru
      _
    %v60 = vld [vmem:[#allocation2] sm:$0xff]
    %v61 = vld [vmem:[#allocation2 + $0x8] sm:$0xff]
    %v62 = vld [vmem:[#allocation2 + $0x10] sm:$0xff]
    %v63 = vld [vmem:[#allocation2 + $0x18] sm:$0xff]
    %v64 = vld [vmem:[#allocation2 + $0x20] sm:$0xff]
    %v65 = vld [vmem:[#allocation2 + $0x28] sm:$0xff]
    %v66 = vld [vmem:[#allocation2 + $0x30] sm:$0xff]
    %v67 = vld [vmem:[#allocation2 + $0x38] sm:$0xff]
    %v76 = vcombine.high %v60, %v60
    %v77 = vcombine.high %v61, %v61
    %v78 = vcombine.high %v62, %v62
    %v79 = vcombine.high %v63, %v63
    %v80 = vcombine.high %v64, %v64
    %v81 = vcombine.high %v65, %v65
    %v82 = vcombine.high %v66, %v66
    %v83 = vcombine.high %v67, %v67
    %vm92 = vcmask 1043456
    %v93 = vsel %vm92, %v60, 0.0
    %v94 = vsel %vm92, %v76, 0.0
    %v95 = vadd.f32 %v93, %v94
    %96 = vadd.xlane.f32.xlu0 %v95
    %v97 = vpop.xlane.xlu0 %96
    %v98 = vsel %vm92, %v61, 0.0
    %v99 = vsel %vm92, %v77, 0.0
    %v100 = vadd.f32 %v98, %v99
    %101 = vadd.xlane.f32.xlu0 %v100
    %v102 = vpop.xlane.xlu0 %101
    %v103 = vsel %vm92, %v62, 0.0
    %v104 = vsel %vm92, %v78, 0.0
    %v105 = vadd.f32 %v103, %v104
    %106 = vadd.xlane.f32.xlu0 %v105
    %v107 = vpop.xlane.xlu0 %106
    %v108 = vsel %vm92, %v63, 0.0
    %v109 = vsel %vm92, %v79, 0.0
    %v110 = vadd.f32 %v108, %v109
    %111 = vadd.xlane.f32.xlu0 %v110
    %v112 = vpop.xlane.xlu0 %111
    %v113 = vsel %vm92, %v64, 0.0
    %v114 = vsel %vm92, %v80, 0.0
    %v115 = vadd.f32 %v113, %v114
    %116 = vadd.xlane.f32.xlu0 %v115
    %v117 = vpop.xlane.xlu0 %116
    %v118 = vsel %vm92, %v65, 0.0
    %v119 = vsel %vm92, %v81, 0.0
    %v120 = vadd.f32 %v118, %v119
    %121 = vadd.xlane.f32.xlu0 %v120
    %v122 = vpop.xlane.xlu0 %121
    %v123 = vsel %vm92, %v66, 0.0
    %v124 = vsel %vm92, %v82, 0.0
    %v125 = vadd.f32 %v123, %v124
    %126 = vadd.xlane.f32.xlu0 %v125
    %v127 = vpop.xlane.xlu0 %126
    %v128 = vsel %vm92, %v67, 0.0
    %v129 = vsel %vm92, %v83, 0.0
    %v130 = vadd.f32 %v128, %v129
    %131 = vadd.xlane.f32.xlu0 %v130
    %v132 = vpop.xlane.xlu0 %131
    %v133 = vrcp.pop 256.0
    %v134 = vmul.f32 %v97, %v133
    %v135 = vmul.f32 %v102, %v133
    %v136 = vmul.f32 %v107, %v133
    %v137 = vmul.f32 %v112, %v133
    %v138 = vmul.f32 %v117, %v133
    %v139 = vmul.f32 %v122, %v133
    %v140 = vmul.f32 %v127, %v133
    %v141 = vmul.f32 %v132, %v133
    %v142 = vld [vmem:[#allocation5] sm:$0xf]
    %v143 = vld [vmem:[%s2] sm:$0x1]
    %v145 = vlaneseq
    %v146 = vshrl.u32 %v145, 7
    %v147 = vsub.s32 0, %v146
    %v148 = vrot.slane %v143, %v147
    %v158 = vlaneseq
    %v159 = vand.u32 %v158, 127
    %v160 = vlaneseq
    %v161 = vshrl.u32 %v160, 7
    %v162 = vsub.s32 %v159, %v161
    %v163 = vrot.slane %v134, %v162
    %v164 = vlaneseq
    %v165 = vshrl.u32 %v164, 7
    %v166 = vsub.s32 %v159, %v165
    %v167 = vrot.slane %v135, %v166
    %v168 = vlaneseq
    %v169 = vshrl.u32 %v168, 7
    %v170 = vsub.s32 %v159, %v169
    %v171 = vrot.slane %v136, %v170
    %v172 = vlaneseq
    %v173 = vshrl.u32 %v172, 7
    %v174 = vsub.s32 %v159, %v173
    %v175 = vrot.slane %v137, %v174
    %v176 = vlaneseq
    %v177 = vshrl.u32 %v176, 7
    %v178 = vsub.s32 %v159, %v177
    %v179 = vrot.slane %v138, %v178
    %v180 = vlaneseq
    %v181 = vshrl.u32 %v180, 7
    %v182 = vsub.s32 %v159, %v181
    %v183 = vrot.slane %v139, %v182
    %v184 = vlaneseq
    %v185 = vshrl.u32 %v184, 7
    %v186 = vsub.s32 %v159, %v185
    %v187 = vrot.slane %v140, %v186
    %v188 = vlaneseq
    %v189 = vshrl.u32 %v188, 7
    %v190 = vsub.s32 %v159, %v189
    %v191 = vrot.slane %v141, %v190
    %vm192 = vcmask 1041409
    %v193 = vsel %vm192, %v167, %v163
    %vm194 = vcmask 1042434
    %v195 = vsel %vm194, %v171, %v193
    %vm196 = vcmask 1043459
    %v197 = vsel %vm196, %v175, %v195
    %vm198 = vcmask 1044484
    %v199 = vsel %vm198, %v179, %v197
    %vm200 = vcmask 1045509
    %v201 = vsel %vm200, %v183, %v199
    %vm202 = vcmask 1046534
    %v203 = vsel %vm202, %v187, %v201
    %vm204 = vcmask 1047559
    %v205 = vsel %vm204, %v191, %v203
    %vm206 = vcmask 31744
    %v207 = vsel %vm206, %v205, 0
    %v210 = vsel %vm92, %v142, 0
    %212 = vmatprep.subr.mxu0 0.0
    %213 = vmatpush1.msra.mxu0 %v210
    %214 = vmatprep.subr.mxu0 0.0
    %215 = vmatpush1.msra.mxu0 0.0
    %216 = vmatprep.subr.mxu0 0.0
    %217 = vmatpush1.msra.mxu0 0.0
    %218 = vmatprep.subr.mxu0 0.0
    %219 = vmatpush1.msra.mxu0 0.0
    %220 = vmatprep.subr.mxu0 0.0
    %221 = vmatpush1.msra.mxu0 0.0
    %222 = vmatprep.subr.mxu0 0.0
    %223 = vmatpush1.msra.mxu0 0.0
    %224 = vmatprep.subr.mxu0 0.0
    %225 = vmatpush1.msra.mxu0 0.0
    %226 = vmatprep.subr.mxu0 0.0
    %227 = vmatpush1.msra.mxu0 0.0
    %228 = vmatprep.subr.mxu0 0.0
    %229 = vmatpush1.msra.mxu0 0.0
    %230 = vmatprep.subr.mxu0 0.0
    %231 = vmatpush1.msra.mxu0 0.0
    %232 = vmatprep.subr.mxu0 0.0
    %233 = vmatpush1.msra.mxu0 0.0
    %234 = vmatprep.subr.mxu0 0.0
    %235 = vmatpush1.msra.mxu0 0.0
    %236 = vmatprep.subr.mxu0 0.0
    %237 = vmatpush1.msra.mxu0 0.0
    %238 = vmatprep.subr.mxu0 0.0
    %239 = vmatpush1.msra.mxu0 0.0
    %240 = vmatprep.subr.mxu0 0.0
    %241 = vmatpush1.msra.mxu0 0.0
    %242 = vmatprep.subr.mxu0 0.0
    %243 = vmatpush1.msra.mxu0 0.0
    %244 = vmatprep.subr.mxu0 0.0
    %245 = vmatpush1.msra.mxu0 0.0
    %246 = vmatprep.subr.mxu0 0.0
    %247 = vmatpush1.msra.mxu0 0.0
    %248 = vmatprep.subr.mxu0 0.0
    %249 = vmatpush1.msra.mxu0 0.0
    %250 = vmatprep.subr.mxu0 0.0
    %251 = vmatpush1.msra.mxu0 0.0
    %252 = vmatprep.subr.mxu0 0.0
    %253 = vmatpush1.msra.mxu0 0.0
    %254 = vmatprep.subr.mxu0 0.0
    %255 = vmatpush1.msra.mxu0 0.0
    %256 = vmatprep.subr.mxu0 0.0
    %257 = vmatpush1.msra.mxu0 0.0
    %258 = vmatprep.subr.mxu0 0.0
    %259 = vmatpush1.msra.mxu0 0.0
    %260 = vmatprep.subr.mxu0 0.0
    %261 = vmatpush1.msra.mxu0 0.0
    %262 = vmatprep.subr.mxu0 0.0
    %263 = vmatpush1.msra.mxu0 0.0
    %264 = vmatprep.subr.mxu0 0.0
    %265 = vmatpush1.msra.mxu0 0.0
    %266 = vmatprep.subr.mxu0 0.0
    %267 = vmatpush1.msra.mxu0 0.0
    %268 = vmatprep.subr.mxu0 0.0
    %269 = vmatpush1.msra.mxu0 0.0
    %270 = vmatprep.subr.mxu0 0.0
    %271 = vmatpush1.msra.mxu0 0.0
    %272 = vmatprep.subr.mxu0 0.0
    %273 = vmatpush1.msra.mxu0 0.0
    %274 = vmatprep.subr.mxu0 0.0
    %275 = vmatpush1.msra.mxu0 0.0
    %276 = vmatprep.mubr.f32.mxu0 0.0
    %277 = vmatmul.mubr.f32.gmra.mrb[0].mxu0 %v207
    %v278 = vpop.f32.mrb[0].mxu0
    %v279 = vadd.f32 %v148, %v278
    %v280 = vpop.f32.mrb[0].mxu0
    %281 = vdwg.mxu0
    %v282 = vmax.f32 %v279, 0.0
    %v283 = vld [vmem:[%s4] sm:$0x1]
    %v285 = vlaneseq
    %v286 = vshrl.u32 %v285, 7
    %v287 = vsub.s32 0, %v286
    %v288 = vrot.slane %v283, %v287
    %v290 = vld [vmem:[#allocation7] sm:$0xff]
    %v291 = vld [vmem:[#allocation7 + $0x8] sm:$0xff]
    %v292 = vld [vmem:[#allocation7 + $0x10] sm:$0xff]
    %v293 = vld [vmem:[#allocation7 + $0x18] sm:$0xff]
    %v294 = vld [vmem:[#allocation7 + $0x20] sm:$0xff]
    %v295 = vld [vmem:[#allocation7 + $0x28] sm:$0xff]
    %v296 = vld [vmem:[#allocation7 + $0x30] sm:$0xff]
    %v297 = vld [vmem:[#allocation7 + $0x38] sm:$0xff]
    %v298 = vld [vmem:[#allocation7 + $0x40] sm:$0xff]
    %v299 = vld [vmem:[#allocation7 + $0x48] sm:$0xff]
    %v300 = vld [vmem:[#allocation7 + $0x50] sm:$0xff]
    %v301 = vld [vmem:[#allocation7 + $0x58] sm:$0xff]
    %v302 = vld [vmem:[#allocation7 + $0x60] sm:$0xff]
    %v303 = vld [vmem:[#allocation7 + $0x68] sm:$0xff]
    %v304 = vld [vmem:[#allocation7 + $0x70] sm:$0xff]
    %v305 = vld [vmem:[#allocation7 + $0x78] sm:$0xff]
    %306 = vmatprep.subr.mxu0 0.0
    %307 = vmatpush1.msra.mxu0 %v290
    %308 = vmatprep.subr.mxu0 0.0
    %309 = vmatpush1.msra.mxu0 %v291
    %310 = vmatprep.subr.mxu0 0.0
    %311 = vmatpush1.msra.mxu0 %v292
    %312 = vmatprep.subr.mxu0 0.0
    %313 = vmatpush1.msra.mxu0 %v293
    %314 = vmatprep.subr.mxu0 0.0
    %315 = vmatpush1.msra.mxu0 %v294
    %316 = vmatprep.subr.mxu0 0.0
    %317 = vmatpush1.msra.mxu0 %v295
    %318 = vmatprep.subr.mxu0 0.0
    %319 = vmatpush1.msra.mxu0 %v296
    %320 = vmatprep.subr.mxu0 0.0
    %321 = vmatpush1.msra.mxu0 %v297
    %322 = vmatprep.subr.mxu0 0.0
    %323 = vmatpush1.msra.mxu0 %v298
    %324 = vmatprep.subr.mxu0 0.0
    %325 = vmatpush1.msra.mxu0 %v299
    %326 = vmatprep.subr.mxu0 0.0
    %327 = vmatpush1.msra.mxu0 %v300
    %328 = vmatprep.subr.mxu0 0.0
    %329 = vmatpush1.msra.mxu0 %v301
    %330 = vmatprep.subr.mxu0 0.0
    %331 = vmatpush1.msra.mxu0 %v302
    %332 = vmatprep.subr.mxu0 0.0
    %333 = vmatpush1.msra.mxu0 %v303
    %334 = vmatprep.subr.mxu0 0.0
    %335 = vmatpush1.msra.mxu0 %v304
    %336 = vmatprep.subr.mxu0 0.0
    %337 = vmatpush1.msra.mxu0 %v305
    %338 = vmatprep.subr.mxu0 0.0
    %339 = vmatpush1.msra.mxu0 0.0
    %340 = vmatprep.subr.mxu0 0.0
    %341 = vmatpush1.msra.mxu0 0.0
    %342 = vmatprep.subr.mxu0 0.0
    %343 = vmatpush1.msra.mxu0 0.0
    %344 = vmatprep.subr.mxu0 0.0
    %345 = vmatpush1.msra.mxu0 0.0
    %346 = vmatprep.subr.mxu0 0.0
    %347 = vmatpush1.msra.mxu0 0.0
    %348 = vmatprep.subr.mxu0 0.0
    %349 = vmatpush1.msra.mxu0 0.0
    %350 = vmatprep.subr.mxu0 0.0
    %351 = vmatpush1.msra.mxu0 0.0
    %352 = vmatprep.subr.mxu0 0.0
    %353 = vmatpush1.msra.mxu0 0.0
    %354 = vmatprep.subr.mxu0 0.0
    %355 = vmatpush1.msra.mxu0 0.0
    %356 = vmatprep.subr.mxu0 0.0
    %357 = vmatpush1.msra.mxu0 0.0
    %358 = vmatprep.subr.mxu0 0.0
    %359 = vmatpush1.msra.mxu0 0.0
    %360 = vmatprep.subr.mxu0 0.0
    %361 = vmatpush1.msra.mxu0 0.0
    %362 = vmatprep.subr.mxu0 0.0
    %363 = vmatpush1.msra.mxu0 0.0
    %364 = vmatprep.subr.mxu0 0.0
    %365 = vmatpush1.msra.mxu0 0.0
    %366 = vmatprep.subr.mxu0 0.0
    %367 = vmatpush1.msra.mxu0 0.0
    %368 = vmatprep.subr.mxu0 0.0
    %369 = vmatpush1.msra.mxu0 0.0
    %370 = vmatprep.mubr.f32.mxu0 0.0
    %371 = vmatmul.mubr.f32.gmra.mrb[0].mxu0 %v282
    %v372 = vpop.f32.mrb[0].mxu0
    %v373 = vadd.f32 0.0, %v372
    %v374 = vpop.f32.mrb[0].mxu0
    %375 = vdwg.mxu0
    %v376 = vadd.f32 %v288, %v373
    %v377 = vld [vmem:[#allocation7 + $0x80] sm:$0xff]
    %v378 = vld [vmem:[#allocation7 + $0x88] sm:$0xff]
    %v379 = vld [vmem:[#allocation7 + $0x90] sm:$0xff]
    %v380 = vld [vmem:[#allocation7 + $0x98] sm:$0xff]
    %v381 = vld [vmem:[#allocation7 + $0xa0] sm:$0xff]
    %v382 = vld [vmem:[#allocation7 + $0xa8] sm:$0xff]
    %v383 = vld [vmem:[#allocation7 + $0xb0] sm:$0xff]
    %v384 = vld [vmem:[#allocation7 + $0xb8] sm:$0xff]
    %v385 = vld [vmem:[#allocation7 + $0xc0] sm:$0xff]
    %v386 = vld [vmem:[#allocation7 + $0xc8] sm:$0xff]
    %v387 = vld [vmem:[#allocation7 + $0xd0] sm:$0xff]
    %v388 = vld [vmem:[#allocation7 + $0xd8] sm:$0xff]
    %v389 = vld [vmem:[#allocation7 + $0xe0] sm:$0xff]
    %v390 = vld [vmem:[#allocation7 + $0xe8] sm:$0xff]
    %v391 = vld [vmem:[#allocation7 + $0xf0] sm:$0xff]
    %v392 = vld [vmem:[#allocation7 + $0xf8] sm:$0xff]
    %v394 = vrot.slane %v282, 2
    %396 = vmatprep.subr.mxu0 0.0
    %397 = vmatpush1.msra.mxu0 %v377
    %398 = vmatprep.subr.mxu0 0.0
    %399 = vmatpush1.msra.mxu0 %v378
    %400 = vmatprep.subr.mxu0 0.0
    %401 = vmatpush1.msra.mxu0 %v379
    %402 = vmatprep.subr.mxu0 0.0
    %403 = vmatpush1.msra.mxu0 %v380
    %404 = vmatprep.subr.mxu0 0.0
    %405 = vmatpush1.msra.mxu0 %v381
    %406 = vmatprep.subr.mxu0 0.0
    %407 = vmatpush1.msra.mxu0 %v382
    %408 = vmatprep.subr.mxu0 0.0
    %409 = vmatpush1.msra.mxu0 %v383
    %410 = vmatprep.subr.mxu0 0.0
    %411 = vmatpush1.msra.mxu0 %v384
    %412 = vmatprep.subr.mxu0 0.0
    %413 = vmatpush1.msra.mxu0 %v385
    %414 = vmatprep.subr.mxu0 0.0
    %415 = vmatpush1.msra.mxu0 %v386
    %416 = vmatprep.subr.mxu0 0.0
    %417 = vmatpush1.msra.mxu0 %v387
    %418 = vmatprep.subr.mxu0 0.0
    %419 = vmatpush1.msra.mxu0 %v388
    %420 = vmatprep.subr.mxu0 0.0
    %421 = vmatpush1.msra.mxu0 %v389
    %422 = vmatprep.subr.mxu0 0.0
    %423 = vmatpush1.msra.mxu0 %v390
    %424 = vmatprep.subr.mxu0 0.0
    %425 = vmatpush1.msra.mxu0 %v391
    %426 = vmatprep.subr.mxu0 0.0
    %427 = vmatpush1.msra.mxu0 %v392
    %428 = vmatprep.subr.mxu0 0.0
    %429 = vmatpush1.msra.mxu0 0.0
    %430 = vmatprep.subr.mxu0 0.0
    %431 = vmatpush1.msra.mxu0 0.0
    %432 = vmatprep.subr.mxu0 0.0
    %433 = vmatpush1.msra.mxu0 0.0
    %434 = vmatprep.subr.mxu0 0.0
    %435 = vmatpush1.msra.mxu0 0.0
    %436 = vmatprep.subr.mxu0 0.0
    %437 = vmatpush1.msra.mxu0 0.0
    %438 = vmatprep.subr.mxu0 0.0
    %439 = vmatpush1.msra.mxu0 0.0
    %440 = vmatprep.subr.mxu0 0.0
    %441 = vmatpush1.msra.mxu0 0.0
    %442 = vmatprep.subr.mxu0 0.0
    %443 = vmatpush1.msra.mxu0 0.0
    %444 = vmatprep.subr.mxu0 0.0
    %445 = vmatpush1.msra.mxu0 0.0
    %446 = vmatprep.subr.mxu0 0.0
    %447 = vmatpush1.msra.mxu0 0.0
    %448 = vmatprep.subr.mxu0 0.0
    %449 = vmatpush1.msra.mxu0 0.0
    %450 = vmatprep.subr.mxu0 0.0
    %451 = vmatpush1.msra.mxu0 0.0
    %452 = vmatprep.subr.mxu0 0.0
    %453 = vmatpush1.msra.mxu0 0.0
    %454 = vmatprep.subr.mxu0 0.0
    %455 = vmatpush1.msra.mxu0 0.0
    %456 = vmatprep.subr.mxu0 0.0
    %457 = vmatpush1.msra.mxu0 0.0
    %458 = vmatprep.subr.mxu0 0.0
    %459 = vmatpush1.msra.mxu0 0.0
    %460 = vmatprep.mubr.f32.mxu0 0.0
    %461 = vmatmul.mubr.f32.gmra.mrb[0].mxu0 %v394
    %v462 = vpop.f32.mrb[0].mxu0
    %v463 = vadd.f32 0.0, %v462
    %v464 = vpop.f32.mrb[0].mxu0
    %465 = vdwg.mxu0
    %v466 = vadd.f32 %v376, %v463
    %v467 = vld [vmem:[#allocation7 + $0x100] sm:$0xff]
    %v468 = vld [vmem:[#allocation7 + $0x108] sm:$0xff]
    %v469 = vld [vmem:[#allocation7 + $0x110] sm:$0xff]
    %v470 = vld [vmem:[#allocation7 + $0x118] sm:$0xff]
    %v471 = vld [vmem:[#allocation7 + $0x120] sm:$0xff]
    %v472 = vld [vmem:[#allocation7 + $0x128] sm:$0xff]
    %v473 = vld [vmem:[#allocation7 + $0x130] sm:$0xff]
    %v474 = vld [vmem:[#allocation7 + $0x138] sm:$0xff]
    %v475 = vld [vmem:[#allocation7 + $0x140] sm:$0xff]
    %v476 = vld [vmem:[#allocation7 + $0x148] sm:$0xff]
    %v477 = vld [vmem:[#allocation7 + $0x150] sm:$0xff]
    %v478 = vld [vmem:[#allocation7 + $0x158] sm:$0xff]
    %v479 = vld [vmem:[#allocation7 + $0x160] sm:$0xff]
    %v480 = vld [vmem:[#allocation7 + $0x168] sm:$0xff]
    %v481 = vld [vmem:[#allocation7 + $0x170] sm:$0xff]
    %v482 = vld [vmem:[#allocation7 + $0x178] sm:$0xff]
    %v483 = vrot.slane %v282, 4
    %485 = vmatprep.subr.mxu0 0.0
    %486 = vmatpush1.msra.mxu0 %v467
    %487 = vmatprep.subr.mxu0 0.0
    %488 = vmatpush1.msra.mxu0 %v468
    %489 = vmatprep.subr.mxu0 0.0
    %490 = vmatpush1.msra.mxu0 %v469
    %491 = vmatprep.subr.mxu0 0.0
    %492 = vmatpush1.msra.mxu0 %v470
    %493 = vmatprep.subr.mxu0 0.0
    %494 = vmatpush1.msra.mxu0 %v471
    %495 = vmatprep.subr.mxu0 0.0
    %496 = vmatpush1.msra.mxu0 %v472
    %497 = vmatprep.subr.mxu0 0.0
    %498 = vmatpush1.msra.mxu0 %v473
    %499 = vmatprep.subr.mxu0 0.0
    %500 = vmatpush1.msra.mxu0 %v474
    %501 = vmatprep.subr.mxu0 0.0
    %502 = vmatpush1.msra.mxu0 %v475
    %503 = vmatprep.subr.mxu0 0.0
    %504 = vmatpush1.msra.mxu0 %v476
    %505 = vmatprep.subr.mxu0 0.0
    %506 = vmatpush1.msra.mxu0 %v477
    %507 = vmatprep.subr.mxu0 0.0
    %508 = vmatpush1.msra.mxu0 %v478
    %509 = vmatprep.subr.mxu0 0.0
    %510 = vmatpush1.msra.mxu0 %v479
    %511 = vmatprep.subr.mxu0 0.0
    %512 = vmatpush1.msra.mxu0 %v480
    %513 = vmatprep.subr.mxu0 0.0
    %514 = vmatpush1.msra.mxu0 %v481
    %515 = vmatprep.subr.mxu0 0.0
    %516 = vmatpush1.msra.mxu0 %v482
    %517 = vmatprep.subr.mxu0 0.0
    %518 = vmatpush1.msra.mxu0 0.0
    %519 = vmatprep.subr.mxu0 0.0
    %520 = vmatpush1.msra.mxu0 0.0
    %521 = vmatprep.subr.mxu0 0.0
    %522 = vmatpush1.msra.mxu0 0.0
    %523 = vmatprep.subr.mxu0 0.0
    %524 = vmatpush1.msra.mxu0 0.0
    %525 = vmatprep.subr.mxu0 0.0
    %526 = vmatpush1.msra.mxu0 0.0
    %527 = vmatprep.subr.mxu0 0.0
    %528 = vmatpush1.msra.mxu0 0.0
    %529 = vmatprep.subr.mxu0 0.0
    %530 = vmatpush1.msra.mxu0 0.0
    %531 = vmatprep.subr.mxu0 0.0
    %532 = vmatpush1.msra.mxu0 0.0
    %533 = vmatprep.subr.mxu0 0.0
    %534 = vmatpush1.msra.mxu0 0.0
    %535 = vmatprep.subr.mxu0 0.0
    %536 = vmatpush1.msra.mxu0 0.0
    %537 = vmatprep.subr.mxu0 0.0
    %538 = vmatpush1.msra.mxu0 0.0
    %539 = vmatprep.subr.mxu0 0.0
    %540 = vmatpush1.msra.mxu0 0.0
    %541 = vmatprep.subr.mxu0 0.0
    %542 = vmatpush1.msra.mxu0 0.0
    %543 = vmatprep.subr.mxu0 0.0
    %544 = vmatpush1.msra.mxu0 0.0
    %545 = vmatprep.subr.mxu0 0.0
    %546 = vmatpush1.msra.mxu0 0.0
    %547 = vmatprep.subr.mxu0 0.0
    %548 = vmatpush1.msra.mxu0 0.0
    %549 = vmatprep.mubr.f32.mxu0 0.0
    %550 = vmatmul.mubr.f32.gmra.mrb[0].mxu0 %v483
    %v551 = vpop.f32.mrb[0].mxu0
    %v552 = vadd.f32 0.0, %v551
    %v553 = vpop.f32.mrb[0].mxu0
    %554 = vdwg.mxu0
    %v555 = vadd.f32 %v466, %v552
    %v556 = vld [vmem:[#allocation7 + $0x180] sm:$0xff]
    %v557 = vld [vmem:[#allocation7 + $0x188] sm:$0xff]
    %v558 = vld [vmem:[#allocation7 + $0x190] sm:$0xff]
    %v559 = vld [vmem:[#allocation7 + $0x198] sm:$0xff]
    %v560 = vld [vmem:[#allocation7 + $0x1a0] sm:$0xff]
    %v561 = vld [vmem:[#allocation7 + $0x1a8] sm:$0xff]
    %v562 = vld [vmem:[#allocation7 + $0x1b0] sm:$0xff]
    %v563 = vld [vmem:[#allocation7 + $0x1b8] sm:$0xff]
    %v564 = vld [vmem:[#allocation7 + $0x1c0] sm:$0xff]
    %v565 = vld [vmem:[#allocation7 + $0x1c8] sm:$0xff]
    %v566 = vld [vmem:[#allocation7 + $0x1d0] sm:$0xff]
    %v567 = vld [vmem:[#allocation7 + $0x1d8] sm:$0xff]
    %v568 = vld [vmem:[#allocation7 + $0x1e0] sm:$0xff]
    %v569 = vld [vmem:[#allocation7 + $0x1e8] sm:$0xff]
    %v570 = vld [vmem:[#allocation7 + $0x1f0] sm:$0xff]
    %v571 = vld [vmem:[#allocation7 + $0x1f8] sm:$0xff]
    %v572 = vrot.slane %v282, 6
    %574 = vmatprep.subr.mxu0 0.0
    %575 = vmatpush1.msra.mxu0 %v556
    %576 = vmatprep.subr.mxu0 0.0
    %577 = vmatpush1.msra.mxu0 %v557
    %578 = vmatprep.subr.mxu0 0.0
    %579 = vmatpush1.msra.mxu0 %v558
    %580 = vmatprep.subr.mxu0 0.0
    %581 = vmatpush1.msra.mxu0 %v559
    %582 = vmatprep.subr.mxu0 0.0
    %583 = vmatpush1.msra.mxu0 %v560
    %584 = vmatprep.subr.mxu0 0.0
    %585 = vmatpush1.msra.mxu0 %v561
    %586 = vmatprep.subr.mxu0 0.0
    %587 = vmatpush1.msra.mxu0 %v562
    %588 = vmatprep.subr.mxu0 0.0
    %589 = vmatpush1.msra.mxu0 %v563
    %590 = vmatprep.subr.mxu0 0.0
    %591 = vmatpush1.msra.mxu0 %v564
    %592 = vmatprep.subr.mxu0 0.0
    %593 = vmatpush1.msra.mxu0 %v565
    %594 = vmatprep.subr.mxu0 0.0
    %595 = vmatpush1.msra.mxu0 %v566
    %596 = vmatprep.subr.mxu0 0.0
    %597 = vmatpush1.msra.mxu0 %v567
    %598 = vmatprep.subr.mxu0 0.0
    %599 = vmatpush1.msra.mxu0 %v568
    %600 = vmatprep.subr.mxu0 0.0
    %601 = vmatpush1.msra.mxu0 %v569
    %602 = vmatprep.subr.mxu0 0.0
    %603 = vmatpush1.msra.mxu0 %v570
    %604 = vmatprep.subr.mxu0 0.0
    %605 = vmatpush1.msra.mxu0 %v571
    %606 = vmatprep.subr.mxu0 0.0
    %607 = vmatpush1.msra.mxu0 0.0
    %608 = vmatprep.subr.mxu0 0.0
    %609 = vmatpush1.msra.mxu0 0.0
    %610 = vmatprep.subr.mxu0 0.0
    %611 = vmatpush1.msra.mxu0 0.0
    %612 = vmatprep.subr.mxu0 0.0
    %613 = vmatpush1.msra.mxu0 0.0
    %614 = vmatprep.subr.mxu0 0.0
    %615 = vmatpush1.msra.mxu0 0.0
    %616 = vmatprep.subr.mxu0 0.0
    %617 = vmatpush1.msra.mxu0 0.0
    %618 = vmatprep.subr.mxu0 0.0
    %619 = vmatpush1.msra.mxu0 0.0
    %620 = vmatprep.subr.mxu0 0.0
    %621 = vmatpush1.msra.mxu0 0.0
    %622 = vmatprep.subr.mxu0 0.0
    %623 = vmatpush1.msra.mxu0 0.0
    %624 = vmatprep.subr.mxu0 0.0
    %625 = vmatpush1.msra.mxu0 0.0
    %626 = vmatprep.subr.mxu0 0.0
    %627 = vmatpush1.msra.mxu0 0.0
    %628 = vmatprep.subr.mxu0 0.0
    %629 = vmatpush1.msra.mxu0 0.0
    %630 = vmatprep.subr.mxu0 0.0
    %631 = vmatpush1.msra.mxu0 0.0
    %632 = vmatprep.subr.mxu0 0.0
    %633 = vmatpush1.msra.mxu0 0.0
    %634 = vmatprep.subr.mxu0 0.0
    %635 = vmatpush1.msra.mxu0 0.0
    %636 = vmatprep.subr.mxu0 0.0
    %637 = vmatpush1.msra.mxu0 0.0
    %638 = vmatprep.mubr.f32.mxu0 0.0
    %639 = vmatmul.mubr.f32.gmra.mrb[0].mxu0 %v572
    %v640 = vpop.f32.mrb[0].mxu0
    %v641 = vadd.f32 0.0, %v640
    %v642 = vpop.f32.mrb[0].mxu0
    %643 = vdwg.mxu0
    %v644 = vadd.f32 %v555, %v641
    %645 = vst [vmem:[#allocation8] sm:$0x3] %v644
    // Predicated region
    $region34: #{tpu_custom_call.1} parent=1 // pred_check
      _
    $region35: #{tpu_custom_call.1} parent=1 // pred_check_branch
      %647 = sbr.rel (0) target = $region37
    $region36: #{tpu_custom_call.1} parent=1 // pred_region
      %s649 = ssub.s32 32, 32
      %650 = vsyncadd [#allocation4], %s649
      %s652 = sshll.u32 [#allocation8], 4
      %s653 = int_to_ptr.vmem [resolvable:$true] %s652
      %655 = dma.vmem_to_hbm [thread:$0]  %s653, 32, %s5, [#allocation4]
    $region37: #{tpu_custom_call.1} parent=1 // pred_fallthru
      _
    // Predicated region
    $region38: #{tpu_custom_call.1} parent=1 // pred_check
      _
    $region39: #{tpu_custom_call.1} parent=1 // pred_check_branch
      %657 = sbr.rel (0) target = $region41
    $region40: #{tpu_custom_call.1} parent=1 // pred_region
      %658 = dma.done [#allocation4], 32
    $region41: #{tpu_custom_call.1} parent=1 // pred_fallthru
      _
    %659 = vsyncpa [#allocation3], 1
    %660 = vsyncpa [#allocation6], 1
    %661 = vsyncpa [#allocation4], 1

</llo_original>
